<compile_context>
chip_gen: v6e
topology: v6e:2x2x1
jax: 0.10.0
libtpu: 0.0.40
codegen_flags: <defaults>
</compile_context>

<pallas_src>
import functools

import jax
import jax.numpy as jnp
from jax.experimental import pallas as pl
from jax.experimental.pallas import tpu as pltpu


def _round_up(v, m):
    return ((v + m - 1) // m) * m


def _pad2(a, r, c):
    pr, pc = r - a.shape[0], c - a.shape[1]
    if pr == 0 and pc == 0:
        return a
    return jnp.pad(a, ((0, pr), (0, pc)))


def _pad1(a, n):
    p = n - a.shape[0]
    return a if p == 0 else jnp.pad(a, (0, p))


def _vmem_limit_bytes():
    """Generation-aware VMEM cap: physical capacity minus headroom."""
    try:
        cap = int(pltpu.get_tpu_info().vmem_capacity_bytes)
    except Exception:
        cap = 64 * 1024 * 1024  # conservative fallback
    # v7x (64 MiB phys) -> ~52 MiB; v5e/v6e (128 MiB phys) -> ~109 MiB.
    return max(32 * 1024 * 1024, min(int(cap * 0.85), cap - 12 * 1024 * 1024))


def _choose_tm(n, max_tm=256):
    """Adaptive token tile: MXU-friendly rows, >= 2 grid steps when possible so
    the 'parallel' token axis can shard across v7x's two TensorCores."""
    tm = min(max_tm, _round_up(max(n, 1), 8))
    if n > 8:
        tm = min(tm, _round_up(-(-n // 2), 8))
    return tm


def _choose_tk_h(hid_p, target=512):
    """Largest multiple of 128 that divides hid_p and is <= target."""
    best = 128
    for m in range(1, hid_p // 128 + 1):
        cand = m * 128
        if cand > target:
            break
        if hid_p % cand == 0:
            best = cand
    return best


def _swiglu_kernel(x_ref, wg_ref, bg_ref, wx_ref, bx_ref, w2_ref, b2_ref,
                   o_ref, acc_ref):
    h = pl.program_id(1)

    @pl.when(h == 0)
    def _():
        acc_ref[...] = jnp.zeros_like(acc_ref)

    # x tile arrives in its original dtype; cast to the MXU compute dtype here
    # (avoids a separate XLA cast pass over x in HBM).
    x = x_ref[...].astype(wg_ref.dtype)                               # (tm, Din)

    # fc1_g / fc1_x for this hidden slice: bf16 MXU matmuls, f32 accumulation.
    g = jnp.dot(x, wg_ref[...], preferred_element_type=jnp.float32) + bg_ref[...]
    v = jnp.dot(x, wx_ref[...], preferred_element_type=jnp.float32) + bx_ref[...]

    # SiLU(gate) * value (sigmoid -> EUP slot), fused into the bf16 cast
    # feeding fc2.
    y = (g * jax.nn.sigmoid(g) * v).astype(w2_ref.dtype)             # (tm, tk_h)

    # Partial fc2 contribution of this hidden slice.
    acc_ref[...] += jnp.dot(y, w2_ref[...], preferred_element_type=jnp.float32)

    @pl.when(h == pl.num_programs(1) - 1)
    def _():
        o_ref[...] = (acc_ref[...] + b2_ref[...]).astype(o_ref.dtype)


def prepare_swiglu_params(wg, bg, wx, bx, w2, b2, *, compute_dtype=jnp.bfloat16):
    """One-time pad + cast of the weights.  Call once, reuse per forward call
    (keeps the weight cast out of the per-call HBM traffic)."""
    d_in, hidden = wg.shape
    d_out = w2.shape[1]
    d_in_p = _round_up(d_in, 128)
    hid_p = _round_up(hidden, 128)
    d_out_p = _round_up(d_out, 128)
    params = dict(
        wg=_pad2(wg, d_in_p, hid_p).astype(compute_dtype),
        wx=_pad2(wx, d_in_p, hid_p).astype(compute_dtype),
        w2=_pad2(w2, hid_p, d_out_p).astype(compute_dtype),
        bg=_pad1(bg, hid_p).reshape(1, hid_p).astype(jnp.float32),
        bx=_pad1(bx, hid_p).reshape(1, hid_p).astype(jnp.float32),
        b2=_pad1(b2, d_out_p).reshape(1, d_out_p).astype(jnp.float32),
    )
    return params, (d_in, hidden, d_out)


def swiglu_pallas(x, params, *, dims, tk_h=512, tm=None, out_dtype=None):
    """Fused SwiGLU MLP: x (..., d_in) -> (..., d_out)."""
    d_in, hidden, d_out = dims
    assert x.shape[-1] == d_in
    out_dtype = out_dtype or x.dtype

    orig_shape = x.shape
    xf = x.reshape(-1, d_in)
    n = xf.shape[0]

    d_in_p, hid_p = params["wg"].shape
    d_out_p = params["w2"].shape[1]

    if tm is None:
        tm = _choose_tm(n)
    n_pad = _round_up(max(n, 1), tm)
    xf_p = _pad2(xf, n_pad, d_in_p)           # keep x dtype; cast is in-kernel

    tk_h = _choose_tk_h(hid_p, target=min(_round_up(tk_h, 128), hid_p))
    n_h = hid_p // tk_h
    grid_m = n_pad // tm
    grid = (grid_m, n_h)

    # Constant-index blocks need no pipelining -> single buffer halves their
    # VMEM footprint (the resident-weight fast path, n_h == 1).
    resident = (n_h == 1)

    def _wspec(shape, index_map):
        if resident:
            return pl.BlockSpec(shape, index_map, pipeline_mode=pl.Buffered(1))
        return pl.BlockSpec(shape, index_map)

    in_specs = [
        pl.BlockSpec((tm, d_in_p), lambda i, h: (i, 0)),               # x
        _wspec((d_in_p, tk_h), lambda i, h: (0, h)),                   # Wg
        _wspec((1, tk_h), lambda i, h: (0, h)),                        # bg
        _wspec((d_in_p, tk_h), lambda i, h: (0, h)),                   # Wx
        _wspec((1, tk_h), lambda i, h: (0, h)),                        # bx
        _wspec((tk_h, d_out_p), lambda i, h: (h, 0)),                  # W2
        pl.BlockSpec((1, d_out_p), lambda i, h: (0, 0),
                     pipeline_mode=pl.Buffered(1)),                    # b2
    ]
    out_specs = pl.BlockSpec((tm, d_out_p), lambda i, h: (i, 0))

    # Advisory cost estimate for the XLA scheduler.
    w_bytes = (2 * d_in_p * hid_p + hid_p * d_out_p) * params["wg"].dtype.itemsize
    flops = 2 * n_pad * d_in_p * hid_p * 2 + 2 * n_pad * hid_p * d_out_p
    bytes_accessed = (
        n_pad * d_in_p * xf_p.dtype.itemsize
        + w_bytes
        + (2 * hid_p + d_out_p) * 4
        + n_pad * d_out_p * jnp.dtype(out_dtype).itemsize
    )

    out = pl.pallas_call(
        _swiglu_kernel,
        out_shape=jax.ShapeDtypeStruct((n_pad, d_out_p), out_dtype),
        grid_spec=pltpu.PrefetchScalarGridSpec(
            num_scalar_prefetch=0,
            grid=grid,
            in_specs=in_specs,
            out_specs=out_specs,
            scratch_shapes=[pltpu.VMEM((tm, d_out_p), jnp.float32)],
        ),
        compiler_params=pltpu.CompilerParams(
            dimension_semantics=("parallel", "arbitrary"),
            vmem_limit_bytes=_vmem_limit_bytes(),
        ),
        cost_estimate=pl.CostEstimate(
            flops=flops,
            transcendentals=n_pad * hid_p,
            bytes_accessed=bytes_accessed,
        ),
    )(xf_p, params["wg"], params["bg"], params["wx"], params["bx"],
      params["w2"], params["b2"])

    out = out[:n, :d_out]
    return out.reshape(*orig_shape[:-1], d_out)


def swiglu_ref(x, wg, bg, wx, bx, w2, b2):
    g = x @ wg + bg
    h = x @ wx + bx
    return (jax.nn.silu(g) * h) @ w2 + b2


if __name__ == "__main__":
    # Small shapes consistent with the module: batch=2, seq=8, in=128,
    # hidden=256, out=128.
    B, S, D_IN, HIDDEN, D_OUT = 2, 8, 128, 256, 128

    key = jax.random.PRNGKey(0)
    kx, kwg, kbg, kwx, kbx, kw2, kb2 = jax.random.split(key, 7)

    x = jax.random.normal(kx, (B, S, D_IN), dtype=jnp.float32)

    # Deterministic synthetic parameters (not a checkpoint load).
    wg = jax.random.normal(kwg, (D_IN, HIDDEN), dtype=jnp.float32) * 0.05
    bg = jax.random.normal(kbg, (HIDDEN,), dtype=jnp.float32) * 0.05
    wx = jax.random.normal(kwx, (D_IN, HIDDEN), dtype=jnp.float32) * 0.05
    bx = jax.random.normal(kbx, (HIDDEN,), dtype=jnp.float32) * 0.05
    w2 = jax.random.normal(kw2, (HIDDEN, D_OUT), dtype=jnp.float32) * 0.05
    b2 = jax.random.normal(kb2, (D_OUT,), dtype=jnp.float32) * 0.05

    # One-time weight pad + bf16 cast (outside the per-call path).
    params, dims = prepare_swiglu_params(wg, bg, wx, bx, w2, b2)
    ref = swiglu_ref(x, wg, bg, wx, bx, w2, b2)

    # Path 1: hidden axis streamed (tk_h=128 -> 2 hidden tiles, accumulator).
    fn_stream = jax.jit(functools.partial(swiglu_pallas, dims=dims, tk_h=128))
    out_s = jax.block_until_ready(fn_stream(x, params))
    assert out_s.shape == (B, S, D_OUT)
    assert jnp.allclose(out_s, ref, atol=3e-2, rtol=3e-2), "streamed mismatch"

    # Path 2: resident weights (single hidden tile, Buffered(1) weight blocks).
    fn_res = jax.jit(functools.partial(swiglu_pallas, dims=dims, tk_h=512))
    out_r = jax.block_until_ready(fn_res(x, params))
    assert out_r.shape == (B, S, D_OUT)
    assert jnp.allclose(out_r, ref, atol=3e-2, rtol=3e-2), "resident mismatch"

    print("KERNEL_OK")
</pallas_src>

<mosaic_0001>
module attributes {stable_mosaic.version = 11 : i64} {
  func.func @_swiglu_kernel(%arg0: i32, %arg1: i32, %arg2: memref<8x128xf32, #tpu.memory_space<vmem>>, %arg3: memref<128x128xbf16, #tpu.memory_space<vmem>>, %arg4: memref<1x128xf32, #tpu.memory_space<vmem>>, %arg5: memref<128x128xbf16, #tpu.memory_space<vmem>>, %arg6: memref<1x128xf32, #tpu.memory_space<vmem>>, %arg7: memref<128x128xbf16, #tpu.memory_space<vmem>>, %arg8: memref<1x128xf32, #tpu.memory_space<vmem>>, %arg9: memref<8x128xf32, #tpu.memory_space<vmem>>, %arg10: memref<8x128xf32, #tpu.memory_space<vmem>>) attributes {dimension_semantics = [#tpu.dimension_semantics<parallel>, #tpu.dimension_semantics<arbitrary>], iteration_bounds = array<i64: 2, 2>, scalar_prefetch = 0 : i64, scratch_operands = 1 : i64, tpu.core_type = #tpu.core_type<tc>, window_params = [{transform_indices = @transform_0, window_bounds = array<i64: 8, 128>}, {transform_indices = @transform_1, window_bounds = array<i64: 128, 128>}, {transform_indices = @transform_2, window_bounds = array<i64: 1, 128>}, {transform_indices = @transform_3, window_bounds = array<i64: 128, 128>}, {transform_indices = @transform_4, window_bounds = array<i64: 1, 128>}, {transform_indices = @transform_5, window_bounds = array<i64: 128, 128>}, {pipeline_mode = #tpu.pipeline_mode<synchronous>, transform_indices = @transform_6, window_bounds = array<i64: 1, 128>}, {transform_indices = @transform_7, window_bounds = array<i64: 8, 128>}]} {
    %c0_i32 = arith.constant 0 : i32
    %0 = arith.cmpi eq, %arg1, %c0_i32 : i32
    %1 = arith.extui %0 : i1 to i32
    %c0_i32_0 = arith.constant 0 : i32
    %2 = arith.cmpi ne, %1, %c0_i32_0 : i32
    scf.if %2 {
      %cst_20 = arith.constant 0.000000e+00 : f32
      %31 = vector.broadcast %cst_20 : f32 to vector<8x128xf32>
      %c0_21 = arith.constant 0 : index
      %c0_22 = arith.constant 0 : index
      %32 = vector.load %arg10[%c0_21, %c0_22] : memref<8x128xf32, #tpu.memory_space<vmem>>, vector<8x128xf32>
      tpu.vector_store %arg10[%c0_21, %c0_22], %31 {strides = array<i32>} : memref<8x128xf32, #tpu.memory_space<vmem>>, vector<8x128xf32>,
    } else {
    }
    %c0 = arith.constant 0 : index
    %c0_1 = arith.constant 0 : index
    %3 = vector.load %arg2[%c0, %c0_1] : memref<8x128xf32, #tpu.memory_space<vmem>>, vector<8x128xf32>
    %4 = arith.truncf %3 : vector<8x128xf32> to vector<8x128xbf16>
    %c0_2 = arith.constant 0 : index
    %c0_3 = arith.constant 0 : index
    %5 = vector.load %arg3[%c0_2, %c0_3] : memref<128x128xbf16, #tpu.memory_space<vmem>>, vector<128x128xbf16>
    %cst = arith.constant dense<0.000000e+00> : vector<8x128xf32>
    %6 = tpu.matmul %4, %5, %cst {dimension_numbers = #tpu.dot_dimension_numbers<[1], [0], [0], [1], [0, 0, 1, 1], [], []>} : vector<8x128xbf16>, vector<128x128xbf16>, vector<8x128xf32> -> vector<8x128xf32>
    %c0_4 = arith.constant 0 : index
    %c0_5 = arith.constant 0 : index
    %7 = vector.load %arg4[%c0_4, %c0_5] : memref<1x128xf32, #tpu.memory_space<vmem>>, vector<1x128xf32>
    %8 = vector.broadcast %7 : vector<1x128xf32> to vector<8x128xf32>
    %9 = arith.addf %6, %8 : vector<8x128xf32>
    %c0_6 = arith.constant 0 : index
    %c0_7 = arith.constant 0 : index
    %10 = vector.load %arg5[%c0_6, %c0_7] : memref<128x128xbf16, #tpu.memory_space<vmem>>, vector<128x128xbf16>
    %cst_8 = arith.constant dense<0.000000e+00> : vector<8x128xf32>
    %11 = tpu.matmul %4, %10, %cst_8 {dimension_numbers = #tpu.dot_dimension_numbers<[1], [0], [0], [1], [0, 0, 1, 1], [], []>} : vector<8x128xbf16>, vector<128x128xbf16>, vector<8x128xf32> -> vector<8x128xf32>
    %c0_9 = arith.constant 0 : index
    %c0_10 = arith.constant 0 : index
    %12 = vector.load %arg6[%c0_9, %c0_10] : memref<1x128xf32, #tpu.memory_space<vmem>>, vector<1x128xf32>
    %13 = vector.broadcast %12 : vector<1x128xf32> to vector<8x128xf32>
    %14 = arith.addf %11, %13 : vector<8x128xf32>
    %15 = arith.negf %9 : vector<8x128xf32>
    %16 = math.exp %15 : vector<8x128xf32>
    %cst_11 = arith.constant 1.000000e+00 : f32
    %17 = vector.broadcast %cst_11 : f32 to vector<8x128xf32>
    %18 = arith.addf %17, %16 : vector<8x128xf32>
    %19 = arith.divf %17, %18 : vector<8x128xf32>
    %20 = arith.mulf %9, %19 : vector<8x128xf32>
    %21 = arith.mulf %20, %14 : vector<8x128xf32>
    %22 = arith.truncf %21 : vector<8x128xf32> to vector<8x128xbf16>
    %c0_12 = arith.constant 0 : index
    %c0_13 = arith.constant 0 : index
    %23 = vector.load %arg10[%c0_12, %c0_13] : memref<8x128xf32, #tpu.memory_space<vmem>>, vector<8x128xf32>
    %c0_14 = arith.constant 0 : index
    %c0_15 = arith.constant 0 : index
    %24 = vector.load %arg7[%c0_14, %c0_15] : memref<128x128xbf16, #tpu.memory_space<vmem>>, vector<128x128xbf16>
    %cst_16 = arith.constant dense<0.000000e+00> : vector<8x128xf32>
    %25 = tpu.matmul %22, %24, %cst_16 {dimension_numbers = #tpu.dot_dimension_numbers<[1], [0], [0], [1], [0, 0, 1, 1], [], []>} : vector<8x128xbf16>, vector<128x128xbf16>, vector<8x128xf32> -> vector<8x128xf32>
    %26 = arith.addf %23, %25 : vector<8x128xf32>
    %c0_17 = arith.constant 0 : index
    %c0_18 = arith.constant 0 : index
    %27 = vector.load %arg10[%c0_17, %c0_18] : memref<8x128xf32, #tpu.memory_space<vmem>>, vector<8x128xf32>
    tpu.vector_store %arg10[%c0_17, %c0_18], %26 {strides = array<i32>} : memref<8x128xf32, #tpu.memory_space<vmem>>, vector<8x128xf32>,
    %c1_i32 = arith.constant 1 : i32
    %28 = arith.cmpi eq, %arg1, %c1_i32 : i32
    %29 = arith.extui %28 : i1 to i32
    %c0_i32_19 = arith.constant 0 : i32
    %30 = arith.cmpi ne, %29, %c0_i32_19 : i32
    scf.if %30 {
      %c0_20 = arith.constant 0 : index
      %c0_21 = arith.constant 0 : index
      %31 = vector.load %arg10[%c0_20, %c0_21] : memref<8x128xf32, #tpu.memory_space<vmem>>, vector<8x128xf32>
      %c0_22 = arith.constant 0 : index
      %c0_23 = arith.constant 0 : index
      %32 = vector.load %arg8[%c0_22, %c0_23] : memref<1x128xf32, #tpu.memory_space<vmem>>, vector<1x128xf32>
      %33 = vector.broadcast %32 : vector<1x128xf32> to vector<8x128xf32>
      %34 = arith.addf %31, %33 : vector<8x128xf32>
      %c0_24 = arith.constant 0 : index
      %c0_25 = arith.constant 0 : index
      %35 = vector.load %arg9[%c0_24, %c0_25] : memref<8x128xf32, #tpu.memory_space<vmem>>, vector<8x128xf32>
      tpu.vector_store %arg9[%c0_24, %c0_25], %34 {strides = array<i32>} : memref<8x128xf32, #tpu.memory_space<vmem>>, vector<8x128xf32>,
    } else {
    }
    return
  }
  func.func @transform_0(%arg0: i32, %arg1: i32) -> (i32, i32) {
    %c0_i32 = arith.constant 0 : i32
    %c0_i32_0 = arith.constant 0 : i32
    return %arg0, %c0_i32 : i32, i32
  }
  func.func @transform_1(%arg0: i32, %arg1: i32) -> (i32, i32) {
    %c0_i32 = arith.constant 0 : i32
    %c0_i32_0 = arith.constant 0 : i32
    return %c0_i32, %arg1 : i32, i32
  }
  func.func @transform_2(%arg0: i32, %arg1: i32) -> (i32, i32) {
    %c0_i32 = arith.constant 0 : i32
    %c0_i32_0 = arith.constant 0 : i32
    return %c0_i32, %arg1 : i32, i32
  }
  func.func @transform_3(%arg0: i32, %arg1: i32) -> (i32, i32) {
    %c0_i32 = arith.constant 0 : i32
    %c0_i32_0 = arith.constant 0 : i32
    return %c0_i32, %arg1 : i32, i32
  }
  func.func @transform_4(%arg0: i32, %arg1: i32) -> (i32, i32) {
    %c0_i32 = arith.constant 0 : i32
    %c0_i32_0 = arith.constant 0 : i32
    return %c0_i32, %arg1 : i32, i32
  }
  func.func @transform_5(%arg0: i32, %arg1: i32) -> (i32, i32) {
    %c0_i32 = arith.constant 0 : i32
    %c0_i32_0 = arith.constant 0 : i32
    return %arg1, %c0_i32 : i32, i32
  }
  func.func @transform_6(%arg0: i32, %arg1: i32) -> (i32, i32) {
    %c0_i32 = arith.constant 0 : i32
    %c0_i32_0 = arith.constant 0 : i32
    %c0_i32_1 = arith.constant 0 : i32
    return %c0_i32, %c0_i32_0 : i32, i32
  }
  func.func @transform_7(%arg0: i32, %arg1: i32) -> (i32, i32) {
    %c0_i32 = arith.constant 0 : i32
    %c0_i32_0 = arith.constant 0 : i32
    return %arg0, %c0_i32 : i32, i32
  }
}

</mosaic_0001>

<llo_original>
// kernel: swiglu_pallas.1
$region0: #{swiglu_pallas.1}
  #allocation0 [shape = 'u32[]', space=smem, size = 0x4, offset = 0x4, fixed_abs, tag = 'smem constant byte address 0x4 - core index']
  #allocation1 [shape = 'u32[144,128]{1,0:T(1,128)}', space=vmem, size = 0x12000, scoped, tag = 'internal scratch']
  #allocation2 [shape = 'f32[8,128]{1,0:T(8,128)}', space=vmem, size = 0x1000, scoped, tag = 'scratch operand']
  %s0 = inlined_call_operand.hbm [shape: f32[16,128], index: 0, kind: input, shape index: {}]
  %s1 = inlined_call_operand.hbm [shape: bf16[128,256], index: 1, kind: input, shape index: {}]
  %s2 = inlined_call_operand.vmem [shape: f32[1,256], index: 2, kind: input, shape index: {}]
  %s3 = inlined_call_operand.hbm [shape: bf16[128,256], index: 3, kind: input, shape index: {}]
  %s4 = inlined_call_operand.vmem [shape: f32[1,256], index: 4, kind: input, shape index: {}]
  %s5 = inlined_call_operand.hbm [shape: bf16[256,128], index: 5, kind: input, shape index: {}]
  %s6 = inlined_call_operand.vmem [shape: f32[1,128], index: 6, kind: input, shape index: {}]
  %s7 = inlined_call_operand.hbm [shape: f32[16,128], index: 7, kind: output, shape index: {}]
  %s8 = sld [smem:[#allocation0]]
  $region85: #{swiglu_pallas.1} parent=0
    _
  %s10 = ssub.s32 1, %s8
  %s11 = scalar_select 0, %s10, %s8
  $region1: #{swiglu_pallas.1} parent=0
    #allocation3 [shape = 'u8[8192]{0}', space=vmem, size = 0x2000, scoped, tag = 'input window, operand 0']
    #allocation4 [shape = 's32[2]{0}', space=sflag, size = 0x8, scoped, tag = 'scoped memory for swiglu_pallas.1']
    #allocation5 [shape = 's32[2]{0}', space=sflag, size = 0x8, scoped, tag = 'scoped memory for swiglu_pallas.1']
    #allocation6 [shape = 'u8[65536]{0}', space=vmem, size = 0x10000, scoped, tag = 'input window, operand 1']
    #allocation7 [shape = 's32[2]{0}', space=sflag, size = 0x8, scoped, tag = 'scoped memory for swiglu_pallas.1']
    #allocation8 [shape = 'u8[65536]{0}', space=vmem, size = 0x10000, scoped, tag = 'input window, operand 3']
    #allocation9 [shape = 'u8[65536]{0}', space=vmem, size = 0x10000, scoped, tag = 'input window, operand 5']
    #allocation10 [shape = 's32[2]{0}', space=sflag, size = 0x8, scoped, tag = 'scoped memory for swiglu_pallas.1']
    #allocation11 [shape = 'u8[8192]{0}', space=vmem, size = 0x2000, scoped, tag = 'output window, operand 0']
    %12 = vsyncpa [#allocation4], 0
    %s13 = scalar_lea.sflag [#allocation4], 1
    %14 = vsyncpa %s13, 0
    %15 = vsyncpa [#allocation7], 0
    %s16 = scalar_lea.sflag [#allocation7], 1
    %17 = vsyncpa %s16, 0
    %18 = vsyncpa [#allocation10], 0
    %s19 = scalar_lea.sflag [#allocation10], 1
    %20 = vsyncpa %s19, 0
    %21 = vsyncpa [#allocation5], 0
    %s22 = scalar_lea.sflag [#allocation5], 1
    %23 = vsyncpa %s22, 0
    loop: start=0, step=1, limit=6
    $region2: #{swiglu_pallas.1} parent=1 // loop_pre_header
      _
    $region3: #{swiglu_pallas.1} parent=1 // loop_header
      %s25 = sphi 0, %s29
      %p26 = scmp.ge.s32.totalorder %s25, 6
      %s32 = sphi 0, %s44
      %s33 = sphi 0, %s40
      %s34 = sphi 0, %s32
      %s35 = sphi 0, %s33
      %s36 = sphi 0, %s34
      %s37 = sphi 0, %s35
      %s47 = sphi 0, %s49
      %s50 = sphi 0, %s47
      %s51 = sphi 0, %s50
      %s67 = sphi 0, %s51
      %s73 = sphi 0, %s75
      %s76 = sphi 0, %s73
      %s77 = sphi 0, %s76
      %s93 = sphi 0, %s77
      %s99 = sphi 0, %s101
      %s102 = sphi 0, %s99
      %s103 = sphi 0, %s102
      %s119 = sphi 0, %s103
      %s125 = sphi 0, %s127
      %s128 = sphi 0, %s125
      %s129 = sphi 0, %s128
      %s145 = sphi 0, %s129
      %s151 = sphi 0, %s153
      %s154 = sphi 0, %s151
      %s155 = sphi 0, %s154
      %s171 = sphi 0, %s155
      %s177 = sphi 0, %s179
      %s180 = sphi 0, %s177
      %s181 = sphi 0, %s180
      %s197 = sphi 0, %s181
      %s201 = sphi 0, %s201
      %s203 = sphi 0, %s201
      %s204 = sphi 0, %s203
      %s218 = sphi 0, %s204
      %s224 = sphi 0, %s226
      %s227 = sphi 0, %s224
      %s228 = sphi 0, %s227
      %s244 = sphi 0, %s228
    $region4: #{swiglu_pallas.1} parent=1 // loop_header_branch
      %28 = sbr.rel (%p26) target = $region8
    $region5: #{swiglu_pallas.1} parent=1 // loop_body
      %s30 = ssub.s32 %s25, 1
      %s31 = ssub.s32 %s25, 2
      %s38 = sadd.s32 1, %s33
      %p39 = scmp.ge.s32.totalorder %s38, 2
      %s40 = scalar_select %p39, 0, %s38
      %s41 = sadd.s32 1, %s32
      %s42 = scalar_select %p39, %s41, %s32
      %p43 = scmp.ge.s32.totalorder %s42, 2
      %s44 = scalar_select %p43, 0, %s42
      %s45 = ssub.s32 %s32, %s44
      %p46 = scmp.eq.s32.totalorder %s45, 0
      %s48 = sadd.s32 %s47, 1
      %s49 = scalar_select %p46, %s47, %s48
      %p52 = pneg %p46
      %p53 = scmp.eq.s32.totalorder %s25, 3
      %p54 = por %p52, %p53
      %p55 = scmp.ne.s32.totalorder %s47, %s50
      %p56 = scmp.eq.s32.totalorder %s25, 0
      %p57 = por %p55, %p56
      %p58 = scmp.ne.s32.totalorder %s47, %s50
      %p59 = scmp.eq.s32.totalorder %s30, 3
      %p60 = por %p58, %p59
      %p61 = scmp.ne.s32.totalorder %s50, %s51
      %p62 = scmp.eq.s32.totalorder %s30, 0
      %p63 = por %p61, %p62
      %p64 = scmp.ne.s32.totalorder %s50, %s51
      %p65 = scmp.eq.s32.totalorder %s31, 3
      %p66 = por %p64, %p65
      %p68 = scmp.ne.s32.totalorder %s51, %s67
      %p69 = scmp.eq.s32.totalorder %s31, 0
      %p70 = por %p68, %p69
      %s71 = ssub.s32 %s33, %s40
      %p72 = scmp.eq.s32.totalorder %s71, 0
      %s74 = sadd.s32 %s73, 1
      %s75 = scalar_select %p72, %s73, %s74
      %p78 = pneg %p72
      %p79 = scmp.eq.s32.totalorder %s25, 3
      %p80 = por %p78, %p79
      %p81 = scmp.ne.s32.totalorder %s73, %s76
      %p82 = scmp.eq.s32.totalorder %s25, 0
      %p83 = por %p81, %p82
      %p84 = scmp.ne.s32.totalorder %s73, %s76
      %p85 = scmp.eq.s32.totalorder %s30, 3
      %p86 = por %p84, %p85
      %p87 = scmp.ne.s32.totalorder %s76, %s77
      %p88 = scmp.eq.s32.totalorder %s30, 0
      %p89 = por %p87, %p88
      %p90 = scmp.ne.s32.totalorder %s76, %s77
      %p91 = scmp.eq.s32.totalorder %s31, 3
      %p92 = por %p90, %p91
      %p94 = scmp.ne.s32.totalorder %s77, %s93
      %p95 = scmp.eq.s32.totalorder %s31, 0
      %p96 = por %p94, %p95
      %s97 = ssub.s32 %s33, %s40
      %p98 = scmp.eq.s32.totalorder %s97, 0
      %s100 = sadd.s32 %s99, 1
      %s101 = scalar_select %p98, %s99, %s100
      %p104 = pneg %p98
      %p105 = scmp.eq.s32.totalorder %s25, 3
      %p106 = por %p104, %p105
      %p107 = scmp.ne.s32.totalorder %s99, %s102
      %p108 = scmp.eq.s32.totalorder %s25, 0
      %p109 = por %p107, %p108
      %p110 = scmp.ne.s32.totalorder %s99, %s102
      %p111 = scmp.eq.s32.totalorder %s30, 3
      %p112 = por %p110, %p111
      %p113 = scmp.ne.s32.totalorder %s102, %s103
      %p114 = scmp.eq.s32.totalorder %s30, 0
      %p115 = por %p113, %p114
      %p116 = scmp.ne.s32.totalorder %s102, %s103
      %p117 = scmp.eq.s32.totalorder %s31, 3
      %p118 = por %p116, %p117
      %p120 = scmp.ne.s32.totalorder %s103, %s119
      %p121 = scmp.eq.s32.totalorder %s31, 0
      %p122 = por %p120, %p121
      %s123 = ssub.s32 %s33, %s40
      %p124 = scmp.eq.s32.totalorder %s123, 0
      %s126 = sadd.s32 %s125, 1
      %s127 = scalar_select %p124, %s125, %s126
      %p130 = pneg %p124
      %p131 = scmp.eq.s32.totalorder %s25, 3
      %p132 = por %p130, %p131
      %p133 = scmp.ne.s32.totalorder %s125, %s128
      %p134 = scmp.eq.s32.totalorder %s25, 0
      %p135 = por %p133, %p134
      %p136 = scmp.ne.s32.totalorder %s125, %s128
      %p137 = scmp.eq.s32.totalorder %s30, 3
      %p138 = por %p136, %p137
      %p139 = scmp.ne.s32.totalorder %s128, %s129
      %p140 = scmp.eq.s32.totalorder %s30, 0
      %p141 = por %p139, %p140
      %p142 = scmp.ne.s32.totalorder %s128, %s129
      %p143 = scmp.eq.s32.totalorder %s31, 3
      %p144 = por %p142, %p143
      %p146 = scmp.ne.s32.totalorder %s129, %s145
      %p147 = scmp.eq.s32.totalorder %s31, 0
      %p148 = por %p146, %p147
      %s149 = ssub.s32 %s33, %s40
      %p150 = scmp.eq.s32.totalorder %s149, 0
      %s152 = sadd.s32 %s151, 1
      %s153 = scalar_select %p150, %s151, %s152
      %p156 = pneg %p150
      %p157 = scmp.eq.s32.totalorder %s25, 3
      %p158 = por %p156, %p157
      %p159 = scmp.ne.s32.totalorder %s151, %s154
      %p160 = scmp.eq.s32.totalorder %s25, 0
      %p161 = por %p159, %p160
      %p162 = scmp.ne.s32.totalorder %s151, %s154
      %p163 = scmp.eq.s32.totalorder %s30, 3
      %p164 = por %p162, %p163
      %p165 = scmp.ne.s32.totalorder %s154, %s155
      %p166 = scmp.eq.s32.totalorder %s30, 0
      %p167 = por %p165, %p166
      %p168 = scmp.ne.s32.totalorder %s154, %s155
      %p169 = scmp.eq.s32.totalorder %s31, 3
      %p170 = por %p168, %p169
      %p172 = scmp.ne.s32.totalorder %s155, %s171
      %p173 = scmp.eq.s32.totalorder %s31, 0
      %p174 = por %p172, %p173
      %s175 = ssub.s32 %s33, %s40
      %p176 = scmp.eq.s32.totalorder %s175, 0
      %s178 = sadd.s32 %s177, 1
      %s179 = scalar_select %p176, %s177, %s178
      %p182 = pneg %p176
      %p183 = scmp.eq.s32.totalorder %s25, 3
      %p184 = por %p182, %p183
      %p185 = scmp.ne.s32.totalorder %s177, %s180
      %p186 = scmp.eq.s32.totalorder %s25, 0
      %p187 = por %p185, %p186
      %p188 = scmp.ne.s32.totalorder %s177, %s180
      %p189 = scmp.eq.s32.totalorder %s30, 3
      %p190 = por %p188, %p189
      %p191 = scmp.ne.s32.totalorder %s180, %s181
      %p192 = scmp.eq.s32.totalorder %s30, 0
      %p193 = por %p191, %p192
      %p194 = scmp.ne.s32.totalorder %s180, %s181
      %p195 = scmp.eq.s32.totalorder %s31, 3
      %p196 = por %p194, %p195
      %p198 = scmp.ne.s32.totalorder %s181, %s197
      %p199 = scmp.eq.s32.totalorder %s31, 0
      %p200 = por %p198, %p199
      %s202 = sadd.s32 %s201, 1
      %p205 = scmp.eq.s32.totalorder %s25, 3
      %p206 = scmp.ne.s32.totalorder %s201, %s203
      %p207 = scmp.eq.s32.totalorder %s25, 0
      %p208 = por %p206, %p207
      %p209 = scmp.ne.s32.totalorder %s201, %s203
      %p210 = scmp.eq.s32.totalorder %s30, 3
      %p211 = por %p209, %p210
      %p212 = scmp.ne.s32.totalorder %s203, %s204
      %p213 = scmp.eq.s32.totalorder %s30, 0
      %p214 = por %p212, %p213
      %p215 = scmp.ne.s32.totalorder %s203, %s204
      %p216 = scmp.eq.s32.totalorder %s31, 3
      %p217 = por %p215, %p216
      %p219 = scmp.ne.s32.totalorder %s204, %s218
      %p220 = scmp.eq.s32.totalorder %s31, 0
      %p221 = por %p219, %p220
      %s222 = ssub.s32 %s32, %s44
      %p223 = scmp.eq.s32.totalorder %s222, 0
      %s225 = sadd.s32 %s224, 1
      %s226 = scalar_select %p223, %s224, %s225
      %p229 = pneg %p223
      %p230 = scmp.eq.s32.totalorder %s25, 3
      %p231 = por %p229, %p230
      %p232 = scmp.ne.s32.totalorder %s224, %s227
      %p233 = scmp.eq.s32.totalorder %s25, 0
      %p234 = por %p232, %p233
      %p235 = scmp.ne.s32.totalorder %s224, %s227
      %p236 = scmp.eq.s32.totalorder %s30, 3
      %p237 = por %p235, %p236
      %p238 = scmp.ne.s32.totalorder %s227, %s228
      %p239 = scmp.eq.s32.totalorder %s30, 0
      %p240 = por %p238, %p239
      %p241 = scmp.ne.s32.totalorder %s227, %s228
      %p242 = scmp.eq.s32.totalorder %s31, 3
      %p243 = por %p241, %p242
      %p245 = scmp.ne.s32.totalorder %s228, %s244
      %p246 = scmp.eq.s32.totalorder %s31, 0
      %p247 = por %p245, %p246
      %p248 = scmp.le.s32.totalorder 1, %s25
      %p249 = scmp.lt.s32.totalorder %s25, 5
      %p250 = pnand %p248, %p249
      %p251 = pneg %p250
      // Predicated region
      $region9: #{swiglu_pallas.1} parent=5 // pred_check
        _
      $region10: #{swiglu_pallas.1} parent=5 // pred_check_branch
        %253 = sbr.rel (%p250) target = $region12
      $region11: #{swiglu_pallas.1} parent=5 // pred_region
        %s254 = ssub.s32 %s25, 1
        // Predicated region
        $region13: #{swiglu_pallas.1} parent=11 // pred_check
          %p255 = pneg %p214
        $region14: #{swiglu_pallas.1} parent=11 // pred_check_branch
          %257 = sbr.rel (%p255) target = $region16
        $region15: #{swiglu_pallas.1} parent=11 // pred_region
          _
        $region16: #{swiglu_pallas.1} parent=11 // pred_fallthru
          _
      $region12: #{swiglu_pallas.1} parent=5 // pred_fallthru
        _
      %p258 = scmp.lt.s32.totalorder %s25, 4
      // Predicated region
      $region17: #{swiglu_pallas.1} parent=5 // pred_check
        %p259 = pneg %p258
      $region18: #{swiglu_pallas.1} parent=5 // pred_check_branch
        %261 = sbr.rel (%p259) target = $region20
      $region19: #{swiglu_pallas.1} parent=5 // pred_region
        // Predicated region
        $region21: #{swiglu_pallas.1} parent=19 // pred_check
          %p262 = pneg %p57
        $region22: #{swiglu_pallas.1} parent=19 // pred_check_branch
          %264 = sbr.rel (%p262) target = $region24
        $region23: #{swiglu_pallas.1} parent=19 // pred_region
          %s265 = sand.u32 %s47, 1
          %s266 = scalar_lea.sflag [#allocation4], %s265
          %s267 = sand.u32 %s47, 1
          %s268 = smul.addr %s267, 8
          %s269 = scalar_lea.vmem [#allocation3], %s268
          %s271 = ssub.s32 128, 128
          %272 = vsyncadd %s266, %s271
          %s273 = smul.addr %s32, 128
          %s274 = scalar_lea.hbm %s0, %s273
          %s276 = sshll.u32 %s269, 4
          %s277 = int_to_ptr.vmem [resolvable:$true] %s276
          %279 = dma.hbm_to_vmem [thread:$0]  %s274, 128, %s277, %s266
        $region24: #{swiglu_pallas.1} parent=19 // pred_fallthru
          _
        // Predicated region
        $region25: #{swiglu_pallas.1} parent=19 // pred_check
          %p280 = pneg %p83
        $region26: #{swiglu_pallas.1} parent=19 // pred_check_branch
          %282 = sbr.rel (%p280) target = $region28
        $region27: #{swiglu_pallas.1} parent=19 // pred_region
          %s283 = sand.u32 %s25, 1
          %s284 = scalar_lea.sflag [#allocation7], %s283
          %s285 = sand.u32 %s73, 1
          %s286 = smul.addr %s285, 64
          %s287 = scalar_lea.vmem [#allocation6], %s286
          %s289 = ssub.s32 1024, 1024
          %290 = vsyncadd %s284, %s289
          %s291 = smul.addr %s33, 64
          %s292 = scalar_lea.hbm %s1, %s291
          %s293 = sshll.u32 %s287, 4
          %s294 = int_to_ptr.vmem [resolvable:$true] %s293
          %299 = dma.hbm_to_vmem [thread:$0]  %s292, 1024, %s294, %s284, 128, 64, 4
        $region28: #{swiglu_pallas.1} parent=19 // pred_fallthru
          _
        // Predicated region
        $region29: #{swiglu_pallas.1} parent=19 // pred_check
          %p300 = pneg %p109
        $region30: #{swiglu_pallas.1} parent=19 // pred_check_branch
          %302 = sbr.rel (%p300) target = $region32
        $region31: #{swiglu_pallas.1} parent=19 // pred_region
          %p303 = scmp.lt.s32.totalorder %s33, 1
          %s304 = scalar_select %p303, %s33, 1
          %s305 = scalar_lea.vmem %s2, %s304
        $region32: #{swiglu_pallas.1} parent=19 // pred_fallthru
          _
        // Predicated region
        $region33: #{swiglu_pallas.1} parent=19 // pred_check
          %p306 = pneg %p135
        $region34: #{swiglu_pallas.1} parent=19 // pred_check_branch
          %308 = sbr.rel (%p306) target = $region36
        $region35: #{swiglu_pallas.1} parent=19 // pred_region
          %s309 = sand.u32 %s25, 1
          %s310 = scalar_lea.sflag [#allocation7], %s309
          %s311 = sand.u32 %s125, 1
          %s312 = smul.addr %s311, 64
          %s313 = scalar_lea.vmem [#allocation8], %s312
          %s315 = ssub.s32 1024, 1024
          %316 = vsyncadd %s310, %s315
          %s317 = smul.addr %s33, 64
          %s318 = scalar_lea.hbm %s3, %s317
          %s319 = sshll.u32 %s313, 4
          %s320 = int_to_ptr.vmem [resolvable:$true] %s319
          %325 = dma.hbm_to_vmem [thread:$0]  %s318, 1024, %s320, %s310, 128, 64, 4
        $region36: #{swiglu_pallas.1} parent=19 // pred_fallthru
          _
        // Predicated region
        $region37: #{swiglu_pallas.1} parent=19 // pred_check
          %p326 = pneg %p161
        $region38: #{swiglu_pallas.1} parent=19 // pred_check_branch
          %328 = sbr.rel (%p326) target = $region40
        $region39: #{swiglu_pallas.1} parent=19 // pred_region
          %p329 = scmp.lt.s32.totalorder %s33, 1
          %s330 = scalar_select %p329, %s33, 1
          %s331 = scalar_lea.vmem %s4, %s330
        $region40: #{swiglu_pallas.1} parent=19 // pred_fallthru
          _
        // Predicated region
        $region41: #{swiglu_pallas.1} parent=19 // pred_check
          %p332 = pneg %p187
        $region42: #{swiglu_pallas.1} parent=19 // pred_check_branch
          %334 = sbr.rel (%p332) target = $region44
        $region43: #{swiglu_pallas.1} parent=19 // pred_region
          %s335 = sand.u32 %s177, 1
          %s336 = scalar_lea.sflag [#allocation10], %s335
          %s337 = sand.u32 %s177, 1
          %s338 = smul.addr %s337, 64
          %s339 = scalar_lea.vmem [#allocation9], %s338
          %s340 = smul.u32 16, %s33
          %s342 = ssub.s32 1024, 1024
          %343 = vsyncadd %s336, %s342
          %s344 = smul.addr %s340, 64
          %s345 = scalar_lea.hbm %s5, %s344
          %s346 = sshll.u32 %s339, 4
          %s347 = int_to_ptr.vmem [resolvable:$true] %s346
          %352 = dma.hbm_to_vmem [thread:$0]  %s345, 1024, %s347, %s336, 64, 64, 4
        $region44: #{swiglu_pallas.1} parent=19 // pred_fallthru
          _
      $region20: #{swiglu_pallas.1} parent=5 // pred_fallthru
        _
      %p353 = scmp.le.s32.totalorder 1, %s25
      %p354 = scmp.lt.s32.totalorder %s25, 5
      %p355 = pnand %p353, %p354
      %p356 = pneg %p355
      // Predicated region
      $region45: #{swiglu_pallas.1} parent=5 // pred_check
        _
      $region46: #{swiglu_pallas.1} parent=5 // pred_check_branch
        %358 = sbr.rel (%p355) target = $region48
      $region47: #{swiglu_pallas.1} parent=5 // pred_region
        %s359 = ssub.s32 %s25, 1
        %s360 = sand.u32 %s50, 1
        %s361 = scalar_lea.sflag [#allocation4], %s360
        %s362 = sand.u32 %s50, 1
        %s363 = smul.addr %s362, 8
        %s364 = scalar_lea.vmem [#allocation3], %s363
        // Predicated region
        $region49: #{swiglu_pallas.1} parent=47 // pred_check
          %p365 = pneg %p63
        $region50: #{swiglu_pallas.1} parent=47 // pred_check_branch
          %367 = sbr.rel (%p365) target = $region52
        $region51: #{swiglu_pallas.1} parent=47 // pred_region
          %368 = dma.done %s361, 128
        $region52: #{swiglu_pallas.1} parent=47 // pred_fallthru
          _
        %s369 = sand.u32 %s30, 1
        %s370 = scalar_lea.sflag [#allocation7], %s369
        %s371 = sand.u32 %s76, 1
        %s372 = smul.addr %s371, 64
        %s373 = scalar_lea.vmem [#allocation6], %s372
        // Predicated region
        $region53: #{swiglu_pallas.1} parent=47 // pred_check
          %p374 = pneg %p89
        $region54: #{swiglu_pallas.1} parent=47 // pred_check_branch
          %376 = sbr.rel (%p374) target = $region56
        $region55: #{swiglu_pallas.1} parent=47 // pred_region
          %377 = dma.done %s370, 1024
        $region56: #{swiglu_pallas.1} parent=47 // pred_fallthru
          _
        %s378 = sand.u32 %s30, 1
        %s379 = scalar_lea.sflag [#allocation7], %s378
        %s380 = sand.u32 %s128, 1
        %s381 = smul.addr %s380, 64
        %s382 = scalar_lea.vmem [#allocation8], %s381
        // Predicated region
        $region57: #{swiglu_pallas.1} parent=47 // pred_check
          %p383 = pneg %p141
        $region58: #{swiglu_pallas.1} parent=47 // pred_check_branch
          %385 = sbr.rel (%p383) target = $region60
        $region59: #{swiglu_pallas.1} parent=47 // pred_region
          %386 = dma.done %s379, 1024
        $region60: #{swiglu_pallas.1} parent=47 // pred_fallthru
          _
        %s387 = sand.u32 %s180, 1
        %s388 = scalar_lea.sflag [#allocation10], %s387
        %s389 = sand.u32 %s180, 1
        %s390 = smul.addr %s389, 64
        %s391 = scalar_lea.vmem [#allocation9], %s390
        // Predicated region
        $region61: #{swiglu_pallas.1} parent=47 // pred_check
          %p392 = pneg %p193
        $region62: #{swiglu_pallas.1} parent=47 // pred_check_branch
          %394 = sbr.rel (%p392) target = $region64
        $region63: #{swiglu_pallas.1} parent=47 // pred_region
          %395 = dma.done %s388, 1024
        $region64: #{swiglu_pallas.1} parent=47 // pred_fallthru
          _
        %s396 = sand.u32 %s50, 1
        %s397 = scalar_lea.sflag [#allocation4], %s396
        %s398 = sand.u32 %s50, 1
        %s399 = smul.addr %s398, 8
        %s400 = scalar_lea.vmem [#allocation3], %s399
        %p401 = pneg %p63
        %p402 = pneg %p60
        %s403 = sand.u32 %s30, 1
        %s404 = scalar_lea.sflag [#allocation7], %s403
        %s405 = sand.u32 %s76, 1
        %s406 = smul.addr %s405, 64
        %s407 = scalar_lea.vmem [#allocation6], %s406
        %p408 = pneg %p89
        %p409 = pneg %p86
        %p410 = scmp.lt.s32.totalorder %s35, 1
        %s411 = scalar_select %p410, %s35, 1
        %s412 = scalar_lea.vmem %s2, %s411
        %p413 = pneg %p115
        %p414 = pneg %p112
        %s415 = sand.u32 %s30, 1
        %s416 = scalar_lea.sflag [#allocation7], %s415
        %s417 = sand.u32 %s128, 1
        %s418 = smul.addr %s417, 64
        %s419 = scalar_lea.vmem [#allocation8], %s418
        %p420 = pneg %p141
        %p421 = pneg %p138
        %p422 = scmp.lt.s32.totalorder %s35, 1
        %s423 = scalar_select %p422, %s35, 1
        %s424 = scalar_lea.vmem %s4, %s423
        %p425 = pneg %p167
        %p426 = pneg %p164
        %s427 = sand.u32 %s180, 1
        %s428 = scalar_lea.sflag [#allocation10], %s427
        %s429 = sand.u32 %s180, 1
        %s430 = smul.addr %s429, 64
        %s431 = scalar_lea.vmem [#allocation9], %s430
        %p432 = pneg %p193
        %p433 = pneg %p190
        %p434 = pneg %p214
        %p435 = pneg %p211
        %p436 = pneg %p240
        %p437 = pneg %p237
        %s438 = sand.u32 %s227, 1
        %s439 = scalar_lea.sflag [#allocation5], %s438
        %s440 = sand.u32 %s227, 1
        %s441 = smul.addr %s440, 8
        %s442 = scalar_lea.vmem [#allocation11], %s441
        %p443 = scmp.lt.s32.totalorder %s35, 1
        %s444 = scalar_select %p443, %s35, 1
        %s445 = scalar_lea.vmem %s2, %s444
        %p446 = scmp.lt.s32.totalorder %s35, 1
        %s447 = scalar_select %p446, %s35, 1
        %s448 = scalar_lea.vmem %s4, %s447
        %s449 = smul.u32 16, %s35
        %p451 = scmp.eq.s32.totalorder %s35, 0
        // Predicated region
        $region65: #{swiglu_pallas.1} parent=47 // pred_check
          %p452 = pneg %p451
        $region66: #{swiglu_pallas.1} parent=47 // pred_check_branch
          %454 = sbr.rel (%p452) target = $region68
        $region67: #{swiglu_pallas.1} parent=47 // pred_region
          %455 = vst [vmem:[#allocation2] sm:$0xff] 0.0
        $region68: #{swiglu_pallas.1} parent=47 // pred_fallthru
          _
        %v456 = vld [vmem:[%s364] sm:$0xff]
        %v457 = vpack.c.bf16 %v456, %v456
        %v458 = vld [vmem:[%s373] sm:$0xf]
        %v459 = vld [vmem:[%s373 + $0x4] sm:$0xf]
        %v460 = vld [vmem:[%s373 + $0x8] sm:$0xf]
        %v461 = vld [vmem:[%s373 + $0xc] sm:$0xf]
        %v462 = vld [vmem:[%s373 + $0x10] sm:$0xf]
        %v463 = vld [vmem:[%s373 + $0x14] sm:$0xf]
        %v464 = vld [vmem:[%s373 + $0x18] sm:$0xf]
        %v465 = vld [vmem:[%s373 + $0x1c] sm:$0xf]
        %v466 = vld [vmem:[%s373 + $0x20] sm:$0xf]
        %v467 = vld [vmem:[%s373 + $0x24] sm:$0xf]
        %v468 = vld [vmem:[%s373 + $0x28] sm:$0xf]
        %v469 = vld [vmem:[%s373 + $0x2c] sm:$0xf]
        %v470 = vld [vmem:[%s373 + $0x30] sm:$0xf]
        %v471 = vld [vmem:[%s373 + $0x34] sm:$0xf]
        %v472 = vld [vmem:[%s373 + $0x38] sm:$0xf]
        %v473 = vld [vmem:[%s373 + $0x3c] sm:$0xf]
        %v474 = vld [vmem:[%s445] sm:$0x1]
        %v476 = vlaneseq
        %v477 = vshrl.u32 %v476, 7
        %v478 = vsub.s32 0, %v477
        %v479 = vrot.slane %v474, %v478
        %v497 = vunpack.c.l.b16 %v458
        %v498 = vunpack.c.l.b16 %v459
        %v499 = vunpack.c.l.b16 %v460
        %v500 = vunpack.c.l.b16 %v461
        %v501 = vunpack.c.l.b16 %v462
        %v502 = vunpack.c.l.b16 %v463
        %v503 = vunpack.c.l.b16 %v464
        %v504 = vunpack.c.l.b16 %v465
        %v505 = vunpack.c.l.b16 %v466
        %v506 = vunpack.c.l.b16 %v467
        %v507 = vunpack.c.l.b16 %v468
        %v508 = vunpack.c.l.b16 %v469
        %v509 = vunpack.c.l.b16 %v470
        %v510 = vunpack.c.l.b16 %v471
        %v511 = vunpack.c.l.b16 %v472
        %v512 = vunpack.c.l.b16 %v473
        %v513 = vpack.c.b16 %v498, %v497
        %v514 = vpack.c.b16 %v500, %v499
        %v515 = vpack.c.b16 %v502, %v501
        %v516 = vpack.c.b16 %v504, %v503
        %v517 = vpack.c.b16 %v506, %v505
        %v518 = vpack.c.b16 %v508, %v507
        %v519 = vpack.c.b16 %v510, %v509
        %v520 = vpack.c.b16 %v512, %v511
        %529 = vmatprep.subr.bf16.mxu0 0
        %530 = vmatpush1.bf16.msra.mxu0 %v520
        %531 = vmatprep.subr.bf16.mxu0 0
        %532 = vmatpush1.bf16.msra.mxu0 %v519
        %533 = vmatprep.subr.bf16.mxu0 0
        %534 = vmatpush1.bf16.msra.mxu0 %v518
        %535 = vmatprep.subr.bf16.mxu0 0
        %536 = vmatpush1.bf16.msra.mxu0 %v517
        %537 = vmatprep.subr.bf16.mxu0 0
        %538 = vmatpush1.bf16.msra.mxu0 %v516
        %539 = vmatprep.subr.bf16.mxu0 0
        %540 = vmatpush1.bf16.msra.mxu0 %v515
        %541 = vmatprep.subr.bf16.mxu0 0
        %542 = vmatpush1.bf16.msra.mxu0 %v514
        %543 = vmatprep.subr.bf16.mxu0 0
        %544 = vmatpush1.bf16.msra.mxu0 %v513
        %545 = vmatprep.subr.bf16.mxu0 0
        %546 = vmatpush2.bf16.msra.mxu0 0
        %547 = vmatprep.subr.bf16.mxu0 0
        %548 = vmatpush2.bf16.msra.mxu0 0
        %549 = vmatprep.subr.bf16.mxu0 0
        %550 = vmatpush2.bf16.msra.mxu0 0
        %551 = vmatprep.subr.bf16.mxu0 0
        %552 = vmatpush2.bf16.msra.mxu0 0
        %553 = vmatprep.subr.bf16.mxu0 0
        %554 = vmatpush2.bf16.msra.mxu0 0
        %555 = vmatprep.subr.bf16.mxu0 0
        %556 = vmatpush2.bf16.msra.mxu0 0
        %557 = vmatprep.subr.bf16.mxu0 0
        %558 = vmatpush2.bf16.msra.mxu0 0
        %559 = vmatprep.subr.bf16.mxu0 0
        %560 = vmatpush2.bf16.msra.mxu0 0
        %561 = vmatprep.mubr.bf16.mxu0 0
        %562 = vmatmul.mubr.bf16.gmra.mxu0 %v457
        %v563 = vpop.f32.mrf.mxu0
        %v564 = vadd.f32 %v479, %v563
        %v565 = vpop.f32.mrf.mxu0
        %v566 = vpop.f32.mrf.mxu0
        %v567 = vpop.f32.mrf.mxu0
        %568 = vdwg.mxu0
        %v569 = vld [vmem:[%s382] sm:$0xf]
        %v570 = vld [vmem:[%s382 + $0x4] sm:$0xf]
        %v571 = vld [vmem:[%s382 + $0x8] sm:$0xf]
        %v572 = vld [vmem:[%s382 + $0xc] sm:$0xf]
        %v573 = vld [vmem:[%s382 + $0x10] sm:$0xf]
        %v574 = vld [vmem:[%s382 + $0x14] sm:$0xf]
        %v575 = vld [vmem:[%s382 + $0x18] sm:$0xf]
        %v576 = vld [vmem:[%s382 + $0x1c] sm:$0xf]
        %v577 = vld [vmem:[%s382 + $0x20] sm:$0xf]
        %v578 = vld [vmem:[%s382 + $0x24] sm:$0xf]
        %v579 = vld [vmem:[%s382 + $0x28] sm:$0xf]
        %v580 = vld [vmem:[%s382 + $0x2c] sm:$0xf]
        %v581 = vld [vmem:[%s382 + $0x30] sm:$0xf]
        %v582 = vld [vmem:[%s382 + $0x34] sm:$0xf]
        %v583 = vld [vmem:[%s382 + $0x38] sm:$0xf]
        %v584 = vld [vmem:[%s382 + $0x3c] sm:$0xf]
        %v585 = vld [vmem:[%s448] sm:$0x1]
        %v587 = vlaneseq
        %v588 = vshrl.u32 %v587, 7
        %v589 = vsub.s32 0, %v588
        %v590 = vrot.slane %v585, %v589
        %v608 = vunpack.c.l.b16 %v569
        %v609 = vunpack.c.l.b16 %v570
        %v610 = vunpack.c.l.b16 %v571
        %v611 = vunpack.c.l.b16 %v572
        %v612 = vunpack.c.l.b16 %v573
        %v613 = vunpack.c.l.b16 %v574
        %v614 = vunpack.c.l.b16 %v575
        %v615 = vunpack.c.l.b16 %v576
        %v616 = vunpack.c.l.b16 %v577
        %v617 = vunpack.c.l.b16 %v578
        %v618 = vunpack.c.l.b16 %v579
        %v619 = vunpack.c.l.b16 %v580
        %v620 = vunpack.c.l.b16 %v581
        %v621 = vunpack.c.l.b16 %v582
        %v622 = vunpack.c.l.b16 %v583
        %v623 = vunpack.c.l.b16 %v584
        %v624 = vpack.c.b16 %v609, %v608
        %v625 = vpack.c.b16 %v611, %v610
        %v626 = vpack.c.b16 %v613, %v612
        %v627 = vpack.c.b16 %v615, %v614
        %v628 = vpack.c.b16 %v617, %v616
        %v629 = vpack.c.b16 %v619, %v618
        %v630 = vpack.c.b16 %v621, %v620
        %v631 = vpack.c.b16 %v623, %v622
        %640 = vmatprep.subr.bf16.mxu0 0
        %641 = vmatpush1.bf16.msra.mxu0 %v631
        %642 = vmatprep.subr.bf16.mxu0 0
        %643 = vmatpush1.bf16.msra.mxu0 %v630
        %644 = vmatprep.subr.bf16.mxu0 0
        %645 = vmatpush1.bf16.msra.mxu0 %v629
        %646 = vmatprep.subr.bf16.mxu0 0
        %647 = vmatpush1.bf16.msra.mxu0 %v628
        %648 = vmatprep.subr.bf16.mxu0 0
        %649 = vmatpush1.bf16.msra.mxu0 %v627
        %650 = vmatprep.subr.bf16.mxu0 0
        %651 = vmatpush1.bf16.msra.mxu0 %v626
        %652 = vmatprep.subr.bf16.mxu0 0
        %653 = vmatpush1.bf16.msra.mxu0 %v625
        %654 = vmatprep.subr.bf16.mxu0 0
        %655 = vmatpush1.bf16.msra.mxu0 %v624
        %656 = vmatprep.subr.bf16.mxu0 0
        %657 = vmatpush2.bf16.msra.mxu0 0
        %658 = vmatprep.subr.bf16.mxu0 0
        %659 = vmatpush2.bf16.msra.mxu0 0
        %660 = vmatprep.subr.bf16.mxu0 0
        %661 = vmatpush2.bf16.msra.mxu0 0
        %662 = vmatprep.subr.bf16.mxu0 0
        %663 = vmatpush2.bf16.msra.mxu0 0
        %664 = vmatprep.subr.bf16.mxu0 0
        %665 = vmatpush2.bf16.msra.mxu0 0
        %666 = vmatprep.subr.bf16.mxu0 0
        %667 = vmatpush2.bf16.msra.mxu0 0
        %668 = vmatprep.subr.bf16.mxu0 0
        %669 = vmatpush2.bf16.msra.mxu0 0
        %670 = vmatprep.subr.bf16.mxu0 0
        %671 = vmatpush2.bf16.msra.mxu0 0
        %672 = vmatprep.mubr.bf16.mxu0 0
        %673 = vmatmul.mubr.bf16.gmra.mxu0 %v457
        %v674 = vpop.f32.mrf.mxu0
        %v675 = vadd.f32 %v590, %v674
        %v676 = vpop.f32.mrf.mxu0
        %v677 = vpop.f32.mrf.mxu0
        %v678 = vpop.f32.mrf.mxu0
        %679 = vdwg.mxu0
        %v680 = vxor.u32 %v564, 2147483648
        %v681 = vmul.f32 %v680, 1.442695
        %v682 = vpow.pop %v681
        %v683 = vadd.f32 %v682, 1.0
        %v684 = vrcp.pop %v683
        %v685 = vmul.f32 1.0, %v684
        %v686 = vmul.f32 %v564, %v685
        %v687 = vmul.f32 %v686, %v675
        %v688 = vpack.c.bf16 %v687, %v687
        %v689 = vld [vmem:[#allocation2] sm:$0xff]
        %v690 = vld [vmem:[%s391] sm:$0xf]
        %v691 = vld [vmem:[%s391 + $0x4] sm:$0xf]
        %v692 = vld [vmem:[%s391 + $0x8] sm:$0xf]
        %v693 = vld [vmem:[%s391 + $0xc] sm:$0xf]
        %v694 = vld [vmem:[%s391 + $0x10] sm:$0xf]
        %v695 = vld [vmem:[%s391 + $0x14] sm:$0xf]
        %v696 = vld [vmem:[%s391 + $0x18] sm:$0xf]
        %v697 = vld [vmem:[%s391 + $0x1c] sm:$0xf]
        %v698 = vld [vmem:[%s391 + $0x20] sm:$0xf]
        %v699 = vld [vmem:[%s391 + $0x24] sm:$0xf]
        %v700 = vld [vmem:[%s391 + $0x28] sm:$0xf]
        %v701 = vld [vmem:[%s391 + $0x2c] sm:$0xf]
        %v702 = vld [vmem:[%s391 + $0x30] sm:$0xf]
        %v703 = vld [vmem:[%s391 + $0x34] sm:$0xf]
        %v704 = vld [vmem:[%s391 + $0x38] sm:$0xf]
        %v705 = vld [vmem:[%s391 + $0x3c] sm:$0xf]
        %v722 = vunpack.c.l.b16 %v690
        %v723 = vunpack.c.l.b16 %v691
        %v724 = vunpack.c.l.b16 %v692
        %v725 = vunpack.c.l.b16 %v693
        %v726 = vunpack.c.l.b16 %v694
        %v727 = vunpack.c.l.b16 %v695
        %v728 = vunpack.c.l.b16 %v696
        %v729 = vunpack.c.l.b16 %v697
        %v730 = vunpack.c.l.b16 %v698
        %v731 = vunpack.c.l.b16 %v699
        %v732 = vunpack.c.l.b16 %v700
        %v733 = vunpack.c.l.b16 %v701
        %v734 = vunpack.c.l.b16 %v702
        %v735 = vunpack.c.l.b16 %v703
        %v736 = vunpack.c.l.b16 %v704
        %v737 = vunpack.c.l.b16 %v705
        %v738 = vpack.c.b16 %v723, %v722
        %v739 = vpack.c.b16 %v725, %v724
        %v740 = vpack.c.b16 %v727, %v726
        %v741 = vpack.c.b16 %v729, %v728
        %v742 = vpack.c.b16 %v731, %v730
        %v743 = vpack.c.b16 %v733, %v732
        %v744 = vpack.c.b16 %v735, %v734
        %v745 = vpack.c.b16 %v737, %v736
        %754 = vmatprep.subr.bf16.mxu0 0
        %755 = vmatpush1.bf16.msra.mxu0 %v745
        %756 = vmatprep.subr.bf16.mxu0 0
        %757 = vmatpush1.bf16.msra.mxu0 %v744
        %758 = vmatprep.subr.bf16.mxu0 0
        %759 = vmatpush1.bf16.msra.mxu0 %v743
        %760 = vmatprep.subr.bf16.mxu0 0
        %761 = vmatpush1.bf16.msra.mxu0 %v742
        %762 = vmatprep.subr.bf16.mxu0 0
        %763 = vmatpush1.bf16.msra.mxu0 %v741
        %764 = vmatprep.subr.bf16.mxu0 0
        %765 = vmatpush1.bf16.msra.mxu0 %v740
        %766 = vmatprep.subr.bf16.mxu0 0
        %767 = vmatpush1.bf16.msra.mxu0 %v739
        %768 = vmatprep.subr.bf16.mxu0 0
        %769 = vmatpush1.bf16.msra.mxu0 %v738
        %770 = vmatprep.subr.bf16.mxu0 0
        %771 = vmatpush2.bf16.msra.mxu0 0
        %772 = vmatprep.subr.bf16.mxu0 0
        %773 = vmatpush2.bf16.msra.mxu0 0
        %774 = vmatprep.subr.bf16.mxu0 0
        %775 = vmatpush2.bf16.msra.mxu0 0
        %776 = vmatprep.subr.bf16.mxu0 0
        %777 = vmatpush2.bf16.msra.mxu0 0
        %778 = vmatprep.subr.bf16.mxu0 0
        %779 = vmatpush2.bf16.msra.mxu0 0
        %780 = vmatprep.subr.bf16.mxu0 0
        %781 = vmatpush2.bf16.msra.mxu0 0
        %782 = vmatprep.subr.bf16.mxu0 0
        %783 = vmatpush2.bf16.msra.mxu0 0
        %784 = vmatprep.subr.bf16.mxu0 0
        %785 = vmatpush2.bf16.msra.mxu0 0
        %786 = vmatprep.mubr.bf16.mxu0 0
        %787 = vmatmul.mubr.bf16.gmra.mxu0 %v688
        %v788 = vpop.f32.mrf.mxu0
        %v789 = vadd.f32 0.0, %v788
        %v790 = vpop.f32.mrf.mxu0
        %v791 = vpop.f32.mrf.mxu0
        %v792 = vpop.f32.mrf.mxu0
        %793 = vdwg.mxu0
        %v794 = vadd.f32 %v689, %v789
        %795 = vst [vmem:[#allocation2] sm:$0xff] %v794
        %p796 = scmp.eq.s32.totalorder %s35, 1
        // Predicated region
        $region69: #{swiglu_pallas.1} parent=47 // pred_check
          %p797 = pneg %p796
        $region70: #{swiglu_pallas.1} parent=47 // pred_check_branch
          %799 = sbr.rel (%p797) target = $region72
        $region71: #{swiglu_pallas.1} parent=47 // pred_region
          %v800 = vld [vmem:[#allocation2] sm:$0xff]
          %v801 = vld [vmem:[%s6] sm:$0x1]
          %v803 = vlaneseq
          %v804 = vshrl.u32 %v803, 7
          %v805 = vsub.s32 0, %v804
          %v806 = vrot.slane %v801, %v805
          %v808 = vadd.f32 %v800, %v806
          %809 = vst [vmem:[%s442] sm:$0xff] %v808
        $region72: #{swiglu_pallas.1} parent=47 // pred_fallthru
          _
        %s810 = sand.u32 %s227, 1
        %s811 = scalar_lea.sflag [#allocation5], %s810
        %s812 = sand.u32 %s227, 1
        %s813 = smul.addr %s812, 8
        %s814 = scalar_lea.vmem [#allocation11], %s813
        // Predicated region
        $region73: #{swiglu_pallas.1} parent=47 // pred_check
          %p815 = pneg %p237
        $region74: #{swiglu_pallas.1} parent=47 // pred_check_branch
          %817 = sbr.rel (%p815) target = $region76
        $region75: #{swiglu_pallas.1} parent=47 // pred_region
          %s819 = ssub.s32 128, 128
          %820 = vsyncadd %s811, %s819
          %s821 = smul.addr %s34, 128
          %s822 = scalar_lea.hbm %s7, %s821
          %s824 = sshll.u32 %s814, 4
          %s825 = int_to_ptr.vmem [resolvable:$true] %s824
          %827 = dma.vmem_to_hbm [thread:$0]  %s825, 128, %s822, %s811
        $region76: #{swiglu_pallas.1} parent=47 // pred_fallthru
          _
      $region48: #{swiglu_pallas.1} parent=5 // pred_fallthru
        _
      %p828 = scmp.le.s32.totalorder 2, %s25
      // Predicated region
      $region77: #{swiglu_pallas.1} parent=5 // pred_check
        %p829 = pneg %p828
      $region78: #{swiglu_pallas.1} parent=5 // pred_check_branch
        %831 = sbr.rel (%p829) target = $region80
      $region79: #{swiglu_pallas.1} parent=5 // pred_region
        %s832 = ssub.s32 %s25, 2
        // Predicated region
        $region81: #{swiglu_pallas.1} parent=79 // pred_check
          %p833 = pneg %p243
        $region82: #{swiglu_pallas.1} parent=79 // pred_check_branch
          %835 = sbr.rel (%p833) target = $region84
        $region83: #{swiglu_pallas.1} parent=79 // pred_region
          %s836 = sand.u32 %s228, 1
          %s837 = scalar_lea.sflag [#allocation5], %s836
          %s838 = sand.u32 %s228, 1
          %s839 = smul.addr %s838, 8
          %s840 = scalar_lea.vmem [#allocation11], %s839
          %841 = dma.done %s837, 128
        $region84: #{swiglu_pallas.1} parent=79 // pred_fallthru
          _
      $region80: #{swiglu_pallas.1} parent=5 // pred_fallthru
        _
    $region6: #{swiglu_pallas.1} parent=1 // loop_footer
      %s29 = sadd.s32 1, %s25
    $region7: #{swiglu_pallas.1} parent=1 // loop_footer_branch
      %24 = sbr.rel target = $region3
    $region8: #{swiglu_pallas.1} parent=1 // loop_exit
      _
    %842 = vsyncpa [#allocation4], 1
    %s843 = scalar_lea.sflag [#allocation4], 1
    %844 = vsyncpa %s843, 1
    %845 = vsyncpa [#allocation7], 1
    %s846 = scalar_lea.sflag [#allocation7], 1
    %847 = vsyncpa %s846, 1
    %848 = vsyncpa [#allocation10], 1
    %s849 = scalar_lea.sflag [#allocation10], 1
    %850 = vsyncpa %s849, 1
    %851 = vsyncpa [#allocation5], 1
    %s852 = scalar_lea.sflag [#allocation5], 1
    %853 = vsyncpa %s852, 1

</llo_original>
